<compile_context>
chip_gen: v7x
topology: tpu7x:2x2x1
jax: 0.10.0
libtpu: 0.0.40
codegen_flags: <defaults>
</compile_context>

<pallas_src>
import jax
import jax.numpy as jnp
from jax.experimental import pallas as pl
from jax.experimental.pallas import tpu as pltpu


def _round_up(x, m):
    return ((x + m - 1) // m) * m


def _logreg_kernel(x_ref, w_ref, b_ref, o_ref, acc_ref):
    # x_ref: (TB, TF) input dtype   w_ref: (1, TF) input dtype
    # b_ref: (1,) f32 in SMEM       o_ref: (TB, 1)
    # acc_ref: (TB, 128) f32 VMEM scratch (lane-wide partial sums)
    k = pl.program_id(1)

    @pl.when(k == 0)
    def _init():
        acc_ref[...] = jnp.zeros_like(acc_ref)

    x = x_ref[...].astype(jnp.float32)   # (TB, TF)
    w = w_ref[...].astype(jnp.float32)   # (1, TF)

    tf = x.shape[-1]
    acc = acc_ref[...]
    # VPU multiply-accumulate over 128-lane chunks (no MXU, no per-chunk XLU reduce).
    for c in range(tf // 128):
        sl = slice(c * 128, (c + 1) * 128)
        acc = acc + x[:, sl] * w[:, sl]   # (1,128) row broadcasts over sublanes
    acc_ref[...] = acc

    @pl.when(k == pl.num_programs(1) - 1)
    def _epilogue():
        # One cross-lane reduce per batch tile, then bias + sigmoid.
        z = jnp.sum(acc_ref[...], axis=-1, keepdims=True) + b_ref[0]   # (TB, 1) f32
        o_ref[...] = (1.0 / (1.0 + jnp.exp(-z))).astype(o_ref.dtype)


def logistic_regression(x, weight, bias, *, tb_max=512, tf_max=2048):
    """x: (B, F); weight: (1, F) (PyTorch nn.Linear layout); bias: (1,)."""
    B, F = x.shape

    # Feature tile: multiple of 128 (lane width), capped at tf_max.
    F_pad = _round_up(F, 128)
    if F_pad <= tf_max:
        TF = F_pad
    else:
        TF = tf_max
        F_pad = _round_up(F, TF)

    # Batch tile: multiple of 8 (sublanes), capped at tb_max.
    TB = min(tb_max, _round_up(B, 8))
    B_pad = _round_up(B, TB)

    # Zero-pad to tile-aligned shapes (zeros contribute nothing to the dot product;
    # padded rows are sliced off the output).
    x_p = x
    if (B_pad, F_pad) != (B, F):
        x_p = jnp.pad(x, ((0, B_pad - B), (0, F_pad - F)))
    w_p = weight
    if F_pad != F:
        w_p = jnp.pad(weight, ((0, 0), (0, F_pad - F)))
    b_sm = bias.reshape(1).astype(jnp.float32)

    grid = (B_pad // TB, F_pad // TF)   # reduction (F) axis last

    out = pl.pallas_call(
        _logreg_kernel,
        out_shape=jax.ShapeDtypeStruct((B_pad, 1), x.dtype),
        grid_spec=pltpu.PrefetchScalarGridSpec(
            num_scalar_prefetch=0,
            grid=grid,
            in_specs=[
                pl.BlockSpec((TB, TF), lambda i, k: (i, k)),   # x, streamed
                pl.BlockSpec((1, TF), lambda i, k: (0, k)),    # weight, lane-dense
                pl.BlockSpec(memory_space=pltpu.SMEM),         # bias scalar in SMEM
            ],
            out_specs=pl.BlockSpec((TB, 1), lambda i, k: (i, 0)),
            scratch_shapes=[pltpu.VMEM((TB, 128), jnp.float32)],
        ),
        compiler_params=pltpu.CompilerParams(
            dimension_semantics=("parallel", "arbitrary"),
            vmem_limit_bytes=32 * 1024 * 1024,
        ),
    )(x_p, w_p, b_sm)

    return out[:B]


if __name__ == "__main__":
    key = jax.random.PRNGKey(0)
    k_x, k_w, k_b = jax.random.split(key, 3)

    batch, n_features = 8, 32

    # Deterministic parameter init (mimics nn.Linear uniform(-1/sqrt(F), 1/sqrt(F)))
    bound = 1.0 / jnp.sqrt(jnp.float32(n_features))
    weight = jax.random.uniform(k_w, (1, n_features), jnp.float32, -bound, bound)
    bias = jax.random.uniform(k_b, (1,), jnp.float32, -bound, bound)

    x = jax.random.normal(k_x, (batch, n_features), jnp.float32)

    out = logistic_regression(x, weight, bias)
    out = jax.block_until_ready(out)

    # Sanity check against a pure-JAX reference
    ref = jax.nn.sigmoid(x @ weight.T + bias)
    assert out.shape == (batch, 1)
    assert jnp.allclose(out, ref, atol=1e-5, rtol=1e-5)

    print("KERNEL_OK")
</pallas_src>

<mosaic_0001>
module attributes {stable_mosaic.version = 11 : i64} {
  func.func @_logreg_kernel(%arg0: i32, %arg1: i32, %arg2: memref<8x128xf32, #tpu.memory_space<vmem>>, %arg3: memref<1x128xf32, #tpu.memory_space<vmem>>, %arg4: memref<1xf32, #tpu.memory_space<smem>>, %arg5: memref<8x1xf32, #tpu.memory_space<vmem>>, %arg6: memref<8x128xf32, #tpu.memory_space<vmem>>) attributes {dimension_semantics = [#tpu.dimension_semantics<parallel>, #tpu.dimension_semantics<arbitrary>], iteration_bounds = array<i64: 1, 1>, scalar_prefetch = 0 : i64, scratch_operands = 1 : i64, tpu.core_type = #tpu.core_type<tc>, window_params = [{transform_indices = @transform_0, window_bounds = array<i64: 8, 128>}, {transform_indices = @transform_1, window_bounds = array<i64: 1, 128>}, {transform_indices = @transform_2, window_bounds = array<i64: 1>}, {transform_indices = @transform_3, window_bounds = array<i64: 8, 1>}]} {
    %c0_i32 = arith.constant 0 : i32
    %0 = arith.cmpi eq, %arg1, %c0_i32 : i32
    %1 = arith.extui %0 : i1 to i32
    %c0_i32_0 = arith.constant 0 : i32
    %2 = arith.cmpi ne, %1, %c0_i32_0 : i32
    scf.if %2 {
      %cst = arith.constant 0.000000e+00 : f32
      %13 = vector.broadcast %cst : f32 to vector<8x128xf32>
      %c0_10 = arith.constant 0 : index
      %c0_11 = arith.constant 0 : index
      %14 = vector.load %arg6[%c0_10, %c0_11] : memref<8x128xf32, #tpu.memory_space<vmem>>, vector<8x128xf32>
      tpu.vector_store %arg6[%c0_10, %c0_11], %13 {strides = array<i32>} : memref<8x128xf32, #tpu.memory_space<vmem>>, vector<8x128xf32>,
    } else {
    }
    %c0 = arith.constant 0 : index
    %c0_1 = arith.constant 0 : index
    %3 = vector.load %arg2[%c0, %c0_1] : memref<8x128xf32, #tpu.memory_space<vmem>>, vector<8x128xf32>
    %c0_2 = arith.constant 0 : index
    %c0_3 = arith.constant 0 : index
    %4 = vector.load %arg3[%c0_2, %c0_3] : memref<1x128xf32, #tpu.memory_space<vmem>>, vector<1x128xf32>
    %c0_4 = arith.constant 0 : index
    %c0_5 = arith.constant 0 : index
    %5 = vector.load %arg6[%c0_4, %c0_5] : memref<8x128xf32, #tpu.memory_space<vmem>>, vector<8x128xf32>
    %6 = vector.broadcast %4 : vector<1x128xf32> to vector<8x128xf32>
    %7 = arith.mulf %3, %6 : vector<8x128xf32>
    %8 = arith.addf %5, %7 : vector<8x128xf32>
    %c0_6 = arith.constant 0 : index
    %c0_7 = arith.constant 0 : index
    %9 = vector.load %arg6[%c0_6, %c0_7] : memref<8x128xf32, #tpu.memory_space<vmem>>, vector<8x128xf32>
    tpu.vector_store %arg6[%c0_6, %c0_7], %8 {strides = array<i32>} : memref<8x128xf32, #tpu.memory_space<vmem>>, vector<8x128xf32>,
    %c0_i32_8 = arith.constant 0 : i32
    %10 = arith.cmpi eq, %arg1, %c0_i32_8 : i32
    %11 = arith.extui %10 : i1 to i32
    %c0_i32_9 = arith.constant 0 : i32
    %12 = arith.cmpi ne, %11, %c0_i32_9 : i32
    scf.if %12 {
      %c0_10 = arith.constant 0 : index
      %c0_11 = arith.constant 0 : index
      %13 = vector.load %arg6[%c0_10, %c0_11] : memref<8x128xf32, #tpu.memory_space<vmem>>, vector<8x128xf32>
      %cst = arith.constant dense<0.000000e+00> : vector<8xf32>
      %14 = vector.multi_reduction <add>, %13, %cst [1] : vector<8x128xf32> to vector<8xf32>
      %15 = vector.shape_cast %14 : vector<8xf32> to vector<8x1xf32>
      %c0_12 = arith.constant 0 : index
      %16 = memref.load %arg4[%c0_12] : memref<1xf32, #tpu.memory_space<smem>>
      %17 = vector.broadcast %16 : f32 to vector<8x1xf32>
      %18 = arith.addf %15, %17 : vector<8x1xf32>
      %cst_13 = arith.constant 0.000000e+00 : f32
      %19 = vector.broadcast %cst_13 : f32 to vector<8x1xf32>
      %20 = arith.subf %19, %18 : vector<8x1xf32>
      %21 = math.exp %20 : vector<8x1xf32>
      %cst_14 = arith.constant 1.000000e+00 : f32
      %22 = vector.broadcast %cst_14 : f32 to vector<8x1xf32>
      %23 = arith.addf %22, %21 : vector<8x1xf32>
      %cst_15 = arith.constant 1.000000e+00 : f32
      %24 = vector.broadcast %cst_15 : f32 to vector<8x1xf32>
      %25 = arith.divf %24, %23 : vector<8x1xf32>
      %c0_16 = arith.constant 0 : index
      %c0_17 = arith.constant 0 : index
      %26 = vector.load %arg5[%c0_16, %c0_17] : memref<8x1xf32, #tpu.memory_space<vmem>>, vector<8x1xf32>
      tpu.vector_store %arg5[%c0_16, %c0_17], %25 {strides = array<i32>} : memref<8x1xf32, #tpu.memory_space<vmem>>, vector<8x1xf32>,
    } else {
    }
    return
  }
  func.func @transform_0(%arg0: i32, %arg1: i32) -> (i32, i32) {
    %c0_i32 = arith.constant 0 : i32
    return %arg0, %arg1 : i32, i32
  }
  func.func @transform_1(%arg0: i32, %arg1: i32) -> (i32, i32) {
    %c0_i32 = arith.constant 0 : i32
    %c0_i32_0 = arith.constant 0 : i32
    return %c0_i32, %arg1 : i32, i32
  }
  func.func @transform_2(%arg0: i32, %arg1: i32) -> i32 {
    %c0_i32 = arith.constant 0 : i32
    %c0_i32_0 = arith.constant 0 : i32
    return %c0_i32 : i32
  }
  func.func @transform_3(%arg0: i32, %arg1: i32) -> (i32, i32) {
    %c0_i32 = arith.constant 0 : i32
    %c0_i32_0 = arith.constant 0 : i32
    return %arg0, %c0_i32 : i32, i32
  }
}

</mosaic_0001>

<llo_original>
// kernel: tpu_custom_call.1
$region0: #{tpu_custom_call.1}
  #allocation0 [shape = 'u32[]', space=smem, size = 0x4, offset = 0x4, fixed_abs, tag = 'smem constant byte address 0x4 - core index']
  #allocation1 [shape = 'u32[144,128]{1,0:T(1,128)}', space=vmem, size = 0x12000, scoped, tag = 'internal scratch']
  #allocation2 [shape = 'f32[8,128]{1,0:T(8,128)}', space=vmem, size = 0x1000, scoped, tag = 'scratch operand']
  #allocation3 [shape = 'f32[1]{0:T(128)S(6)}', space=smem, size = 0x200, scoped, tag = 'scoped memory for tpu_custom_call.1']
  %s0 = inlined_call_operand.hbm [shape: f32[8,128], index: 0, kind: input, shape index: {}]
  %s1 = inlined_call_operand.vmem [shape: f32[1,128], index: 1, kind: input, shape index: {}]
  %s2 = inlined_call_operand.<no memory space> [shape: f32[1], index: 2, kind: input, shape index: {}]
  %s3 = inlined_call_operand.vmem [shape: f32[8,1], index: 3, kind: output, shape index: {}]
  %s4 = sld [smem:[#allocation0]]
  $region34: #{tpu_custom_call.1} parent=0
    _
  %s6 = ssub.s32 1, %s4
  %s7 = scalar_select 0, %s6, %s4
  %8 = sst [smem:[#allocation3]] %s2
  $region1: #{tpu_custom_call.1} parent=0
    #allocation4 [shape = 'u8[4096]{0}', space=vmem, size = 0x1000, scoped, tag = 'input window, operand 0, single buffered']
    #allocation5 [shape = 's32[1]{0}', space=sflag, size = 0x4, scoped, tag = 'scoped memory for tpu_custom_call.1']
    %9 = vsyncpa [#allocation5], 0
    // Predicated region
    $region2: #{tpu_custom_call.1} parent=1 // pred_check
      _
    $region3: #{tpu_custom_call.1} parent=1 // pred_check_branch
      %11 = sbr.rel (0) target = $region5
    $region4: #{tpu_custom_call.1} parent=1 // pred_region
      %s13 = ssub.s32 128, 128
      %14 = vsyncadd [#allocation5], %s13
      %s16 = sshll.u32 [#allocation4], 4
      %s17 = int_to_ptr.vmem [resolvable:$true] %s16
      %19 = dma.hbm_to_vmem [thread:$0]  %s0, 128, %s17, [#allocation5]
    $region5: #{tpu_custom_call.1} parent=1 // pred_fallthru
      _
    // Predicated region
    $region6: #{tpu_custom_call.1} parent=1 // pred_check
      _
    $region7: #{tpu_custom_call.1} parent=1 // pred_check_branch
      %21 = sbr.rel (0) target = $region9
    $region8: #{tpu_custom_call.1} parent=1 // pred_region
      _
    $region9: #{tpu_custom_call.1} parent=1 // pred_fallthru
      _
    // Predicated region
    $region10: #{tpu_custom_call.1} parent=1 // pred_check
      _
    $region11: #{tpu_custom_call.1} parent=1 // pred_check_branch
      %23 = sbr.rel (0) target = $region13
    $region12: #{tpu_custom_call.1} parent=1 // pred_region
      _
    $region13: #{tpu_custom_call.1} parent=1 // pred_fallthru
      _
    // Predicated region
    $region14: #{tpu_custom_call.1} parent=1 // pred_check
      _
    $region15: #{tpu_custom_call.1} parent=1 // pred_check_branch
      %25 = sbr.rel (0) target = $region17
    $region16: #{tpu_custom_call.1} parent=1 // pred_region
      %26 = dma.done [#allocation5], 128
    $region17: #{tpu_custom_call.1} parent=1 // pred_fallthru
      _
    %p27 = scmp.eq.s32.totalorder 0, 0
    // Predicated region
    $region18: #{tpu_custom_call.1} parent=1 // pred_check
      %p28 = pneg %p27
    $region19: #{tpu_custom_call.1} parent=1 // pred_check_branch
      %30 = sbr.rel (%p28) target = $region21
    $region20: #{tpu_custom_call.1} parent=1 // pred_region
      %31 = vst [vmem:[#allocation2] sm:$0xff] 0.0
    $region21: #{tpu_custom_call.1} parent=1 // pred_fallthru
      _
    %v32 = vld [vmem:[#allocation4] sm:$0xff]
    %v33 = vld [vmem:[%s1] sm:$0x1]
    %v34 = vld [vmem:[#allocation2] sm:$0xff]
    %v36 = vlaneseq
    %v37 = vshrl.u32 %v36, 7
    %v38 = vsub.s32 0, %v37
    %v39 = vrot.slane %v33, %v38
    %v41 = vmul.f32 %v32, %v39
    %v42 = vadd.f32 %v34, %v41
    %43 = vst [vmem:[#allocation2] sm:$0xff] %v42
    // Predicated region
    $region22: #{tpu_custom_call.1} parent=1 // pred_check
      %p44 = pneg %p27
    $region23: #{tpu_custom_call.1} parent=1 // pred_check_branch
      %46 = sbr.rel (%p44) target = $region25
    $region24: #{tpu_custom_call.1} parent=1 // pred_region
      %v47 = vld [vmem:[#allocation2] sm:$0xff]
      %48 = vadd.xlane.f32.xlu0 %v47
      %v49 = vpop.xlane.xlu0 %48
      %s50 = sld [smem:[#allocation3]]
      %v51 = vstv %s50
      %v52 = vadd.f32 %v49, %v51
      %v53 = vsub.f32 0.0, %v52
      %v54 = vmul.f32 %v53, 1.442695
      %v55 = vpow.pop %v54
      %v56 = vadd.f32 %v55, 1.0
      %v57 = vrcp.pop %v56
      %v58 = vmul.f32 1.0, %v57
      %vm59 = vcmask 7168
      %60 = vst.msk [vmem:[%s3] sm:$0xff] %vm59, %v58
    $region25: #{tpu_custom_call.1} parent=1 // pred_fallthru
      _
    // Predicated region
    $region26: #{tpu_custom_call.1} parent=1 // pred_check
      _
    $region27: #{tpu_custom_call.1} parent=1 // pred_check_branch
      %62 = sbr.rel (0) target = $region29
    $region28: #{tpu_custom_call.1} parent=1 // pred_region
      _
    $region29: #{tpu_custom_call.1} parent=1 // pred_fallthru
      _
    // Predicated region
    $region30: #{tpu_custom_call.1} parent=1 // pred_check
      _
    $region31: #{tpu_custom_call.1} parent=1 // pred_check_branch
      %64 = sbr.rel (0) target = $region33
    $region32: #{tpu_custom_call.1} parent=1 // pred_region
      _
    $region33: #{tpu_custom_call.1} parent=1 // pred_fallthru
      _
    %65 = vsyncpa [#allocation5], 1

</llo_original>
